<compile_context>
chip_gen: v5e
topology: v5e:2x2
jax: 0.10.0
libtpu: 0.0.40
codegen_flags: <defaults>
</compile_context>

<pallas_src>
import numpy as np
import jax
import jax.numpy as jnp
from jax import lax
from jax.experimental import pallas as pl
from jax.experimental.pallas import tpu as pltpu


def _round_up(x: int, m: int) -> int:
    return ((x + m - 1) // m) * m


def _chip_info():
    """(is_v7x, is_v5, physical_vmem_bytes) with safe fallbacks."""
    kind = ""
    try:
        kind = jax.devices()[0].device_kind.lower()
    except Exception:
        pass
    is_v7 = "v7" in kind
    is_v5 = "v5" in kind
    vmem_phys = 64 * 1024 * 1024 if is_v7 else 128 * 1024 * 1024
    try:
        vmem_phys = int(pltpu.get_tpu_info().vmem_capacity_bytes)
    except Exception:
        pass
    return is_v7, is_v5, vmem_phys


def _masked_hinge_sum(a, t, an, tneg, rows, margin, n_total, upcast):
    """Per-tile hinge-loss contributions, reduced to a (1, 1) partial sum."""
    if upcast:  # v5e has no bf16 VPU path; elsewhere multiply natively.
        a = a.astype(jnp.float32)
        t = t.astype(jnp.float32)
        an = an.astype(jnp.float32)
        tneg = tneg.astype(jnp.float32)
    s_ii = jnp.sum(a * t, axis=-1, keepdims=True, dtype=jnp.float32)
    s_ai = jnp.sum(an * t, axis=-1, keepdims=True, dtype=jnp.float32)
    s_it = jnp.sum(a * tneg, axis=-1, keepdims=True, dtype=jnp.float32)
    m = jnp.float32(margin)
    # The PyTorch "add only if > 0" on a scalar is exactly ReLU.
    l_ai = jnp.maximum(s_ai - s_ii + m, 0.0)
    l_it = jnp.maximum(s_it - s_ii + m, 0.0)
    # jnp.where (not multiply-by-mask) so garbage bytes in the ragged tail
    # block cannot propagate NaNs into the sum.
    contrib = jnp.where(rows < n_total, l_ai + l_it, 0.0)
    return jnp.sum(contrib, keepdims=True)  # (1, 1) float32


def _make_resident_kernel(margin, n_total, tn, tps, sub, upcast):
    """VMEM-resident tables + SMEM index prefetch + in-VMEM row gather."""

    def kernel(a_idx_ref, t_idx_ref, audio_ref, text_ref, o_ref,
               aneg_buf, tneg_buf, acc_ref):
        c = pl.program_id(0)  # parallel split (megacore on v7x)
        j = pl.program_id(1)  # row-tile loop within the split

        @pl.when(j == 0)
        def _():
            acc_ref[...] = jnp.zeros_like(acc_ref)

        base = (c * tps + j) * tn
        base = pl.multiple_of(base, sub)

        # Gather this tile's negative rows from the resident tables into VMEM
        # scratch (indices come from SMEM scalar prefetch; padded indices = 0).
        def gather_row(r, carry):
            g = base + r
            aneg_buf[pl.ds(r, 1), :] = audio_ref[pl.ds(a_idx_ref[g], 1), :]
            tneg_buf[pl.ds(r, 1), :] = text_ref[pl.ds(t_idx_ref[g], 1), :]
            return carry

        lax.fori_loop(0, tn, gather_row, 0)

        a = audio_ref[pl.ds(base, tn), :]
        t = text_ref[pl.ds(base, tn), :]
        rows = base + lax.broadcasted_iota(jnp.int32, (tn, 1), 0)
        acc_ref[...] = acc_ref[...] + _masked_hinge_sum(
            a, t, aneg_buf[...], tneg_buf[...], rows, margin, n_total, upcast)

        @pl.when(j == pl.num_programs(1) - 1)
        def _():
            partial = jnp.sum(acc_ref[...]) / jnp.float32(n_total)
            o_ref[...] = jnp.full(o_ref.shape, partial, dtype=o_ref.dtype)

    return kernel


def _make_stream_kernel(margin, n_total, tn, tps, upcast):
    """Streaming fallback: negatives pre-gathered in the wrapper (jnp.take)."""

    def kernel(a_ref, t_ref, an_ref, tg_ref, o_ref, acc_ref):
        c = pl.program_id(0)
        j = pl.program_id(1)

        @pl.when(j == 0)
        def _():
            acc_ref[...] = jnp.zeros_like(acc_ref)

        rows = (c * tps + j) * tn + lax.broadcasted_iota(jnp.int32, (tn, 1), 0)
        acc_ref[...] = acc_ref[...] + _masked_hinge_sum(
            a_ref[...], t_ref[...], an_ref[...], tg_ref[...],
            rows, margin, n_total, upcast)

        @pl.when(j == pl.num_programs(1) - 1)
        def _():
            partial = jnp.sum(acc_ref[...]) / jnp.float32(n_total)
            o_ref[...] = jnp.full(o_ref.shape, partial, dtype=o_ref.dtype)

    return kernel


def triplet_ranking_loss_pallas(audio_embeds, text_embeds, fids,
                                margin: float = 1.0, seed: int = 0):
    """audio_embeds, text_embeds: (N, E) float32 or bfloat16.
    fids: length-N python list of file ids (not all identical)."""
    N, E = audio_embeds.shape
    dtype = audio_embeds.dtype
    isz = jnp.dtype(dtype).itemsize
    sub = {4: 8, 2: 16, 1: 32}.get(isz, 8)  # dtype-aware sublane tile

    is_v7, is_v5, vmem_phys = _chip_info()
    upcast = bool(is_v5) and (jnp.dtype(dtype) != jnp.dtype(jnp.float32))

    # Deterministic replication of the negative-sampling logic from forward().
    rng = np.random.RandomState(seed)
    a_idx = np.zeros(N, dtype=np.int32)
    t_idx = np.zeros(N, dtype=np.int32)
    for i in range(N):
        a = i
        while fids[a] == fids[i]:
            a = rng.randint(0, N)
        t = i
        while fids[t] == fids[i] or a == t:
            t = rng.randint(0, N)
        a_idx[i] = a
        t_idx[i] = t

    # ---- tiling ------------------------------------------------------------
    # Cap rows so each (tn, E) operand stays <= ~1 MiB and never above 512 rows
    # (vreg / spill pressure from the (tn, 1) temporaries).
    cap_rows = max(sub, ((1 << 20) // max(1, E * isz)) // sub * sub)
    tn = min(512, cap_rows, _round_up(N, sub))
    tn = max(sub, (tn // sub) * sub)
    tiles_total = -(-N // tn)
    # 2-way megacore split only on v7x, and only when it divides the tile count
    # evenly (avoids fully out-of-bounds blocks); v5e/v6e have a single TC.
    n_split = 2 if (is_v7 and tiles_total >= 2 and tiles_total % 2 == 0) else 1
    tps = tiles_total // n_split
    n_res = tiles_total * tn  # padded row count (only the index vectors pad)

    # Pad only the int32 index vectors (host side, cheap); index 0 is valid.
    a_idx_p = np.zeros(n_res, dtype=np.int32)
    t_idx_p = np.zeros(n_res, dtype=np.int32)
    a_idx_p[:N] = a_idx
    t_idx_p[:N] = t_idx
    a_idx_j = jnp.asarray(a_idx_p)
    t_idx_j = jnp.asarray(t_idx_p)

    out_shape = jax.ShapeDtypeStruct((n_split, 8, 128), jnp.float32)

    # VMEM-resident path when both tables (double-buffered) + gather scratch
    # fit the chip's budget; otherwise stream tiles with wrapper-side gather.
    resident_need = ((2 * 2 * n_res * E + 2 * tn * E) * isz
                     + n_split * 2 * 8 * 128 * 4 + (1 << 16))
    resident_budget = int(0.55 * vmem_phys) if is_v7 else int(0.70 * vmem_phys)

    if resident_need <= resident_budget:
        vmem_limit = min(int(0.80 * vmem_phys),
                         max(32 * 1024 * 1024, resident_need + (8 << 20)))
        full_spec = pl.BlockSpec((n_res, E), lambda c, j, *_: (0, 0))
        out_spec = pl.BlockSpec((1, 8, 128), lambda c, j, *_: (c, 0, 0))
        call = pl.pallas_call(
            _make_resident_kernel(float(margin), N, tn, tps, sub, upcast),
            out_shape=out_shape,
            grid_spec=pltpu.PrefetchScalarGridSpec(
                num_scalar_prefetch=2,
                grid=(n_split, tps),
                in_specs=[full_spec, full_spec],
                out_specs=out_spec,
                scratch_shapes=[
                    pltpu.VMEM((tn, E), dtype),       # gathered negative audio
                    pltpu.VMEM((tn, E), dtype),       # gathered negative text
                    pltpu.VMEM((1, 1), jnp.float32),  # scalar accumulator
                ]),
            compiler_params=pltpu.CompilerParams(
                dimension_semantics=("parallel", "arbitrary"),
                vmem_limit_bytes=int(vmem_limit)),
        )

        def run(audio, text, a_ix, t_ix):
            out = call(a_ix, t_ix, audio, text)
            # Each parallel split wrote loss_partial / N into its block.
            return jnp.sum(out[:, 0, 0])
    else:
        # TODO(synk): large-N fallback still materializes negatives via
        # jnp.take (fused under the same jit); an in-kernel per-row HBM DMA
        # gather would cut its traffic further for large E.
        vmem_limit = min(int(0.80 * vmem_phys),
                         max(32 * 1024 * 1024,
                             4 * 2 * tn * E * isz + (16 << 20)))
        row_spec = pl.BlockSpec((tn, E), lambda c, j: (c * tps + j, 0))
        out_spec = pl.BlockSpec((1, 8, 128), lambda c, j: (c, 0, 0))
        call = pl.pallas_call(
            _make_stream_kernel(float(margin), N, tn, tps, upcast),
            out_shape=out_shape,
            grid_spec=pltpu.PrefetchScalarGridSpec(
                num_scalar_prefetch=0,
                grid=(n_split, tps),
                in_specs=[row_spec, row_spec, row_spec, row_spec],
                out_specs=out_spec,
                scratch_shapes=[pltpu.VMEM((1, 1), jnp.float32)]),
            compiler_params=pltpu.CompilerParams(
                dimension_semantics=("parallel", "arbitrary"),
                vmem_limit_bytes=int(vmem_limit)),
        )

        def run(audio, text, a_ix, t_ix):
            # Indices are already padded to n_res, so jnp.take emits
            # tile-aligned negatives; the anchors' ragged tail is handled
            # in-kernel by the row mask (no whole-array jnp.pad).
            audio_neg = jnp.take(audio, a_ix, axis=0)
            text_neg = jnp.take(text, t_ix, axis=0)
            out = call(audio, text, audio_neg, text_neg)
            return jnp.sum(out[:, 0, 0])

    return jax.jit(run)(audio_embeds, text_embeds, a_idx_j, t_idx_j)


def _reference_loss(audio, text, fids, margin, seed):
    # Pure-NumPy reference mirroring the PyTorch forward.
    N = audio.shape[0]
    rng = np.random.RandomState(seed)
    audio = np.asarray(audio, dtype=np.float32)
    text = np.asarray(text, dtype=np.float32)
    loss = 0.0
    for i in range(N):
        a = i
        while fids[a] == fids[i]:
            a = rng.randint(0, N)
        t = i
        while fids[t] == fids[i] or a == t:
            t = rng.randint(0, N)
        s_ii = float(np.dot(audio[i], text[i]))
        s_ai = float(np.dot(audio[a], text[i]))
        s_it = float(np.dot(audio[i], text[t]))
        l_ai = s_ai - s_ii + margin
        if l_ai > 0.0:
            loss += l_ai
        l_it = s_it - s_ii + margin
        if l_it > 0.0:
            loss += l_it
    return loss / N


if __name__ == "__main__":
    key = jax.random.PRNGKey(0)
    k1, k2, k3, k4, k5, k6 = jax.random.split(key, 6)

    # Case 1: paired fids, N a multiple of the sublane tile.
    N1, E1 = 8, 32
    audio1 = jax.random.normal(k1, (N1, E1), dtype=jnp.float32)
    text1 = jax.random.normal(k2, (N1, E1), dtype=jnp.float32)
    fids1 = [0, 0, 1, 1, 2, 2, 3, 3]
    loss1 = jax.block_until_ready(
        triplet_ranking_loss_pallas(audio1, text1, fids1, margin=1.0, seed=0))
    ref1 = _reference_loss(audio1, text1, fids1, margin=1.0, seed=0)
    assert abs(float(loss1) - ref1) < 1e-3 * max(1.0, abs(ref1)), (float(loss1), ref1)

    # Case 2: ragged N (not tile-aligned) exercises the masked partial block.
    N2, E2 = 13, 32
    audio2 = jax.random.normal(k3, (N2, E2), dtype=jnp.float32)
    text2 = jax.random.normal(k4, (N2, E2), dtype=jnp.float32)
    fids2 = list(range(N2))
    loss2 = jax.block_until_ready(
        triplet_ranking_loss_pallas(audio2, text2, fids2, margin=1.0, seed=0))
    ref2 = _reference_loss(audio2, text2, fids2, margin=1.0, seed=0)
    assert abs(float(loss2) - ref2) < 1e-3 * max(1.0, abs(ref2)), (float(loss2), ref2)

    # Case 3: multi-tile N (> 512 rows) exercises the accumulator across row
    # tiles and the in-kernel VMEM gather at scale.
    N3, E3 = 600, 64
    audio3 = jax.random.normal(k5, (N3, E3), dtype=jnp.float32)
    text3 = jax.random.normal(k6, (N3, E3), dtype=jnp.float32)
    fids3 = list(range(N3))
    loss3 = jax.block_until_ready(
        triplet_ranking_loss_pallas(audio3, text3, fids3, margin=1.0, seed=0))
    ref3 = _reference_loss(audio3, text3, fids3, margin=1.0, seed=0)
    assert abs(float(loss3) - ref3) < 2e-3 * max(1.0, abs(ref3)), (float(loss3), ref3)

    print("KERNEL_OK")
</pallas_src>

<mosaic_0001>
module attributes {stable_mosaic.version = 11 : i64} {
  func.func @kernel(%arg0: i32, %arg1: i32, %arg2: memref<8xi32, #tpu.memory_space<smem>>, %arg3: memref<8xi32, #tpu.memory_space<smem>>, %arg4: memref<8x32xf32, #tpu.memory_space<vmem>>, %arg5: memref<8x32xf32, #tpu.memory_space<vmem>>, %arg6: memref<1x8x128xf32, #tpu.memory_space<vmem>>, %arg7: memref<8x32xf32, #tpu.memory_space<vmem>>, %arg8: memref<8x32xf32, #tpu.memory_space<vmem>>, %arg9: memref<1x1xf32, #tpu.memory_space<vmem>>) attributes {dimension_semantics = [#tpu.dimension_semantics<parallel>, #tpu.dimension_semantics<arbitrary>], iteration_bounds = array<i64: 1, 1>, scalar_prefetch = 2 : i64, scratch_operands = 3 : i64, tpu.core_type = #tpu.core_type<tc>, window_params = [{pipeline_mode = #tpu.pipeline_mode<synchronous>, transform_indices = @transform_0, window_bounds = array<i64: 8, 32>}, {pipeline_mode = #tpu.pipeline_mode<synchronous>, transform_indices = @transform_1, window_bounds = array<i64: 8, 32>}, {transform_indices = @transform_2, window_bounds = array<i64: 1, 8, 128>}]} {
    %c0_i32 = arith.constant 0 : i32
    %0 = arith.cmpi eq, %arg1, %c0_i32 : i32
    %1 = arith.extui %0 : i1 to i32
    %c0_i32_0 = arith.constant 0 : i32
    %2 = arith.cmpi ne, %1, %c0_i32_0 : i32
    scf.if %2 {
      %cst_25 = arith.constant 0.000000e+00 : f32
      %52 = vector.broadcast %cst_25 : f32 to vector<1x1xf32>
      %c0_26 = arith.constant 0 : index
      %c0_27 = arith.constant 0 : index
      %53 = vector.load %arg9[%c0_26, %c0_27] : memref<1x1xf32, #tpu.memory_space<vmem>>, vector<1x1xf32>
      tpu.vector_store %arg9[%c0_26, %c0_27], %52 {strides = array<i32>} : memref<1x1xf32, #tpu.memory_space<vmem>>, vector<1x1xf32>,
    } else {
    }
    %c1_i32 = arith.constant 1 : i32
    %3 = arith.muli %arg0, %c1_i32 : i32
    %4 = arith.addi %3, %arg1 : i32
    %c8_i32 = arith.constant 8 : i32
    %5 = arith.muli %4, %c8_i32 : i32
    %6 = tpu.assume_multiple %5, 8 : i32
    %c0_i32_1 = arith.constant 0 : i32
    %c8_i32_2 = arith.constant 8 : i32
    %7 = arith.addi %c0_i32_1, %c8_i32_2 : i32
    %c1_i32_3 = arith.constant 1 : i32
    scf.for %arg10 = %c0_i32_1 to %7 step %c1_i32_3  : i32 {
      %52 = arith.addi %6, %arg10 : i32
      %53 = arith.index_cast %52 : i32 to index
      %54 = memref.load %arg2[%53] : memref<8xi32, #tpu.memory_space<smem>>
      %55 = arith.index_cast %54 : i32 to index
      %c0_25 = arith.constant 0 : index
      %56 = vector.load %arg4[%55, %c0_25] : memref<8x32xf32, #tpu.memory_space<vmem>>, vector<1x32xf32>
      %57 = arith.index_cast %arg10 : i32 to index
      %c0_26 = arith.constant 0 : index
      %58 = vector.load %arg7[%57, %c0_26] : memref<8x32xf32, #tpu.memory_space<vmem>>, vector<1x32xf32>
      tpu.vector_store %arg7[%57, %c0_26], %56 {strides = array<i32>} : memref<8x32xf32, #tpu.memory_space<vmem>>, vector<1x32xf32>,
      %59 = arith.index_cast %52 : i32 to index
      %60 = memref.load %arg3[%59] : memref<8xi32, #tpu.memory_space<smem>>
      %61 = arith.index_cast %60 : i32 to index
      %c0_27 = arith.constant 0 : index
      %62 = vector.load %arg5[%61, %c0_27] : memref<8x32xf32, #tpu.memory_space<vmem>>, vector<1x32xf32>
      %63 = arith.index_cast %arg10 : i32 to index
      %c0_28 = arith.constant 0 : index
      %64 = vector.load %arg8[%63, %c0_28] : memref<8x32xf32, #tpu.memory_space<vmem>>, vector<1x32xf32>
      tpu.vector_store %arg8[%63, %c0_28], %62 {strides = array<i32>} : memref<8x32xf32, #tpu.memory_space<vmem>>, vector<1x32xf32>,
    }
    %c8_i32_4 = arith.constant 8 : i32
    %8 = arith.index_cast %6 : i32 to index
    %c0 = arith.constant 0 : index
    %9 = vector.load %arg4[%8, %c0] : memref<8x32xf32, #tpu.memory_space<vmem>>, vector<8x32xf32>
    %10 = arith.index_cast %6 : i32 to index
    %c0_5 = arith.constant 0 : index
    %11 = vector.load %arg5[%10, %c0_5] : memref<8x32xf32, #tpu.memory_space<vmem>>, vector<8x32xf32>
    %12 = tpu.iota {dimensions = array<i32: 0>} : vector<8x1xi32>
    %13 = vector.broadcast %6 : i32 to vector<8x1xi32>
    %14 = arith.addi %13, %12 : vector<8x1xi32>
    %c0_6 = arith.constant 0 : index
    %c0_7 = arith.constant 0 : index
    %15 = vector.load %arg9[%c0_6, %c0_7] : memref<1x1xf32, #tpu.memory_space<vmem>>, vector<1x1xf32>
    %c0_8 = arith.constant 0 : index
    %c0_9 = arith.constant 0 : index
    %16 = vector.load %arg7[%c0_8, %c0_9] : memref<8x32xf32, #tpu.memory_space<vmem>>, vector<8x32xf32>
    %c0_10 = arith.constant 0 : index
    %c0_11 = arith.constant 0 : index
    %17 = vector.load %arg8[%c0_10, %c0_11] : memref<8x32xf32, #tpu.memory_space<vmem>>, vector<8x32xf32>
    %18 = arith.mulf %9, %11 : vector<8x32xf32>
    %cst = arith.constant dense<0.000000e+00> : vector<8xf32>
    %19 = vector.multi_reduction <add>, %18, %cst [1] : vector<8x32xf32> to vector<8xf32>
    %20 = vector.shape_cast %19 : vector<8xf32> to vector<8x1xf32>
    %21 = arith.mulf %16, %11 : vector<8x32xf32>
    %cst_12 = arith.constant dense<0.000000e+00> : vector<8xf32>
    %22 = vector.multi_reduction <add>, %21, %cst_12 [1] : vector<8x32xf32> to vector<8xf32>
    %23 = vector.shape_cast %22 : vector<8xf32> to vector<8x1xf32>
    %24 = arith.mulf %9, %17 : vector<8x32xf32>
    %cst_13 = arith.constant dense<0.000000e+00> : vector<8xf32>
    %25 = vector.multi_reduction <add>, %24, %cst_13 [1] : vector<8x32xf32> to vector<8xf32>
    %26 = vector.shape_cast %25 : vector<8xf32> to vector<8x1xf32>
    %27 = arith.subf %23, %20 : vector<8x1xf32>
    %cst_14 = arith.constant 1.000000e+00 : f32
    %28 = vector.broadcast %cst_14 : f32 to vector<8x1xf32>
    %29 = arith.addf %27, %28 : vector<8x1xf32>
    %cst_15 = arith.constant 0.000000e+00 : f32
    %30 = vector.broadcast %cst_15 : f32 to vector<8x1xf32>
    %31 = arith.maximumf %29, %30 : vector<8x1xf32>
    %32 = arith.subf %26, %20 : vector<8x1xf32>
    %cst_16 = arith.constant 1.000000e+00 : f32
    %33 = vector.broadcast %cst_16 : f32 to vector<8x1xf32>
    %34 = arith.addf %32, %33 : vector<8x1xf32>
    %cst_17 = arith.constant 0.000000e+00 : f32
    %35 = vector.broadcast %cst_17 : f32 to vector<8x1xf32>
    %36 = arith.maximumf %34, %35 : vector<8x1xf32>
    %c8_i32_18 = arith.constant 8 : i32
    %37 = vector.broadcast %c8_i32_18 : i32 to vector<8x1xi32>
    %38 = arith.cmpi slt, %14, %37 : vector<8x1xi32>
    %39 = arith.addf %31, %36 : vector<8x1xf32>
    %cst_19 = arith.constant 0.000000e+00 : f32
    %40 = vector.broadcast %cst_19 : f32 to vector<8x1xf32>
    %41 = arith.select %38, %39, %40 : vector<8x1xi1>, vector<8x1xf32>
    %42 = vector.shape_cast %41 : vector<8x1xf32> to vector<1x8x1xf32>
    %cst_20 = arith.constant dense<0.000000e+00> : vector<1xf32>
    %43 = vector.multi_reduction <add>, %42, %cst_20 [1, 2] : vector<1x8x1xf32> to vector<1xf32>
    %44 = vector.shape_cast %43 : vector<1xf32> to vector<1x1x1xf32>
    %45 = vector.extract %44[0, 0, 0] : f32 from vector<1x1x1xf32>
    %46 = vector.broadcast %45 : f32 to vector<1x1xf32>
    %47 = arith.addf %15, %46 : vector<1x1xf32>
    %c0_21 = arith.constant 0 : index
    %c0_22 = arith.constant 0 : index
    %48 = vector.load %arg9[%c0_21, %c0_22] : memref<1x1xf32, #tpu.memory_space<vmem>>, vector<1x1xf32>
    tpu.vector_store %arg9[%c0_21, %c0_22], %47 {strides = array<i32>} : memref<1x1xf32, #tpu.memory_space<vmem>>, vector<1x1xf32>,
    %c0_i32_23 = arith.constant 0 : i32
    %49 = arith.cmpi eq, %arg1, %c0_i32_23 : i32
    %50 = arith.extui %49 : i1 to i32
    %c0_i32_24 = arith.constant 0 : i32
    %51 = arith.cmpi ne, %50, %c0_i32_24 : i32
    scf.if %51 {
      %c0_25 = arith.constant 0 : index
      %c0_26 = arith.constant 0 : index
      %52 = vector.load %arg9[%c0_25, %c0_26] : memref<1x1xf32, #tpu.memory_space<vmem>>, vector<1x1xf32>
      %53 = vector.shape_cast %52 : vector<1x1xf32> to vector<1x1x1xf32>
      %cst_27 = arith.constant dense<0.000000e+00> : vector<1xf32>
      %54 = vector.multi_reduction <add>, %53, %cst_27 [1, 2] : vector<1x1x1xf32> to vector<1xf32>
      %55 = vector.shape_cast %54 : vector<1xf32> to vector<1x1x1xf32>
      %56 = vector.extract %55[0, 0, 0] : f32 from vector<1x1x1xf32>
      %cst_28 = arith.constant 8.000000e+00 : f32
      %57 = arith.divf %56, %cst_28 : f32
      %58 = vector.broadcast %57 : f32 to vector<1x8x128xf32>
      %c0_29 = arith.constant 0 : index
      %c0_30 = arith.constant 0 : index
      %c0_31 = arith.constant 0 : index
      %59 = vector.load %arg6[%c0_29, %c0_30, %c0_31] : memref<1x8x128xf32, #tpu.memory_space<vmem>>, vector<1x8x128xf32>
      tpu.vector_store %arg6[%c0_29, %c0_30, %c0_31], %58 {strides = array<i32>} : memref<1x8x128xf32, #tpu.memory_space<vmem>>, vector<1x8x128xf32>,
    } else {
    }
    return
  }
  func.func @transform_0(%arg0: i32, %arg1: i32, %arg2: memref<8xi32, #tpu.memory_space<smem>>, %arg3: memref<8xi32, #tpu.memory_space<smem>>) -> (i32, i32) {
    %c0_i32 = arith.constant 0 : i32
    %c0_i32_0 = arith.constant 0 : i32
    %c0_i32_1 = arith.constant 0 : i32
    return %c0_i32, %c0_i32_0 : i32, i32
  }
  func.func @transform_1(%arg0: i32, %arg1: i32, %arg2: memref<8xi32, #tpu.memory_space<smem>>, %arg3: memref<8xi32, #tpu.memory_space<smem>>) -> (i32, i32) {
    %c0_i32 = arith.constant 0 : i32
    %c0_i32_0 = arith.constant 0 : i32
    %c0_i32_1 = arith.constant 0 : i32
    return %c0_i32, %c0_i32_0 : i32, i32
  }
  func.func @transform_2(%arg0: i32, %arg1: i32, %arg2: memref<8xi32, #tpu.memory_space<smem>>, %arg3: memref<8xi32, #tpu.memory_space<smem>>) -> (i32, i32, i32) {
    %c0_i32 = arith.constant 0 : i32
    %c0_i32_0 = arith.constant 0 : i32
    %c0_i32_1 = arith.constant 0 : i32
    return %arg0, %c0_i32, %c0_i32_0 : i32, i32, i32
  }
}

</mosaic_0001>

<llo_original>
// kernel: run.1
$region0: #{run.1}
  #allocation0 [shape = 'u32[]', space=smem, size = 0x4, offset = 0x4, fixed_abs, tag = 'smem constant byte address 0x4 - core index']
  #allocation1 [shape = 'u32[72,128]{1,0:T(1,128)}', space=vmem, size = 0x9000, scoped, tag = 'internal scratch']
  #allocation2 [shape = 'f32[8,32]{1,0:T(8,128)}', space=vmem, size = 0x1000, scoped, tag = 'scratch operand']
  #allocation3 [shape = 'f32[8,32]{1,0:T(8,128)}', space=vmem, size = 0x1000, scoped, tag = 'scratch operand']
  #allocation4 [shape = 'f32[1,1]{1,0:T(1,128)}', space=vmem, size = 0x200, scoped, tag = 'scratch operand']
  #allocation5 [shape = 's32[1]{0}', space=sflag, size = 0x4, scoped, tag = 'scoped memory for run.1']
  #allocation6 [shape = 'u8[512]{0}', space=smem, size = 0x200, scoped, tag = 'prefetched SMEM operand 0']
  #allocation7 [shape = 'u8[512]{0}', space=smem, size = 0x200, scoped, tag = 'prefetched SMEM operand 1']
  %s0 = inlined_call_operand.vmem [shape: s32[8], index: 0, kind: input, shape index: {}]
  %s1 = inlined_call_operand.vmem [shape: s32[8], index: 1, kind: input, shape index: {}]
  %s2 = inlined_call_operand.hbm [shape: f32[8,32], index: 2, kind: input, shape index: {}]
  %s3 = inlined_call_operand.hbm [shape: f32[8,32], index: 3, kind: input, shape index: {}]
  %s4 = inlined_call_operand.vmem [shape: f32[1,8,128], index: 4, kind: output, shape index: {}]
  %s5 = sld [smem:[#allocation0]]
  $region41: #{run.1} parent=0
    _
  %s7 = ssub.s32 1, %s5
  %s8 = scalar_select 0, %s7, %s5
  %s10 = sshll.u32 %s0, 4
  %s11 = int_to_ptr.vmem [resolvable:$true] %s10
  %13 = dma.vmem_to_smem %s11, 16, [#allocation6], [#allocation5]
  %s15 = sshll.u32 %s1, 4
  %s16 = int_to_ptr.vmem [resolvable:$true] %s15
  %18 = dma.vmem_to_smem %s16, 16, [#allocation7], [#allocation5]
  %20 = dma.done [#allocation5], 32
  %21 = sfence
  $region1: #{run.1} parent=0
    #allocation8 [shape = 'u8[4096]{0}', space=vmem, size = 0x1000, scoped, tag = 'input window, operand 2, single buffered']
    #allocation9 [shape = 's32[1]{0}', space=sflag, size = 0x4, scoped, tag = 'scoped memory for run.1']
    #allocation10 [shape = 'u8[4096]{0}', space=vmem, size = 0x1000, scoped, tag = 'input window, operand 3, single buffered']
    #allocation11 [shape = 's32[1]{0}', space=sflag, size = 0x4, scoped, tag = 'scoped memory for run.1']
    %22 = vsyncpa [#allocation9], 0
    %23 = vsyncpa [#allocation11], 0
    // Predicated region
    $region2: #{run.1} parent=1 // pred_check
      _
    $region3: #{run.1} parent=1 // pred_check_branch
      %25 = sbr.rel (0) target = $region5
    $region4: #{run.1} parent=1 // pred_region
      %27 = vsyncadd [#allocation9], 0
      %s29 = sshll.u32 %s2, 4
      %s30 = int_to_ptr.hbm [resolvable:$true] %s29
      %s31 = sshll.u32 [#allocation8], 4
      %s32 = int_to_ptr.vmem [resolvable:$true] %s31
      %34 = dma.hbm_to_vmem [thread:$0]  %s30, 128, %s32, [#allocation9]
    $region5: #{run.1} parent=1 // pred_fallthru
      _
    // Predicated region
    $region6: #{run.1} parent=1 // pred_check
      _
    $region7: #{run.1} parent=1 // pred_check_branch
      %36 = sbr.rel (0) target = $region9
    $region8: #{run.1} parent=1 // pred_region
      %38 = vsyncadd [#allocation11], 0
      %s40 = sshll.u32 %s3, 4
      %s41 = int_to_ptr.hbm [resolvable:$true] %s40
      %s42 = sshll.u32 [#allocation10], 4
      %s43 = int_to_ptr.vmem [resolvable:$true] %s42
      %45 = dma.hbm_to_vmem [thread:$0]  %s41, 128, %s43, [#allocation11]
    $region9: #{run.1} parent=1 // pred_fallthru
      _
    // Predicated region
    $region10: #{run.1} parent=1 // pred_check
      _
    $region11: #{run.1} parent=1 // pred_check_branch
      %47 = sbr.rel (0) target = $region13
    $region12: #{run.1} parent=1 // pred_region
      %49 = dma.done [#allocation9], 128
    $region13: #{run.1} parent=1 // pred_fallthru
      _
    // Predicated region
    $region14: #{run.1} parent=1 // pred_check
      _
    $region15: #{run.1} parent=1 // pred_check_branch
      %51 = sbr.rel (0) target = $region17
    $region16: #{run.1} parent=1 // pred_region
      %53 = dma.done [#allocation11], 128
    $region17: #{run.1} parent=1 // pred_fallthru
      _
    %p54 = scmp.eq.s32.totalorder 0, 0
    // Predicated region
    $region18: #{run.1} parent=1 // pred_check
      %p55 = pneg %p54
    $region19: #{run.1} parent=1 // pred_check_branch
      %57 = sbr.rel (%p55) target = $region21
    $region20: #{run.1} parent=1 // pred_region
      %vm58 = vcmask 0
      %59 = vst.msk [vmem:[#allocation4] sm:$0x1] %vm58, 0.0
    $region21: #{run.1} parent=1 // pred_fallthru
      _
    %s60 = sadd.s32 0, 0
    %s61 = smul.u32 %s60, 8
    loop: start=0, step=1, limit=8
    $region22: #{run.1} parent=1 // loop_pre_header
      _
    $region23: #{run.1} parent=1 // loop_header
      %s63 = sphi 0, %s67
      %p64 = scmp.ge.s32.totalorder %s63, 8
    $region24: #{run.1} parent=1 // loop_header_branch
      %66 = sbr.rel (%p64) target = $region28
    $region25: #{run.1} parent=1 // loop_body
      %s68 = sadd.s32 %s61, %s63
      %s69 = sld [smem:[#allocation6 + %s68]]
      %s70 = scalar_lea.vmem [#allocation8], %s69
      %v71 = vld [vmem:[%s70] sm:$0x1]
      %s72 = scalar_lea.vmem [#allocation2], %s63
      %vm73 = vcmask 253952
      %74 = vst.msk [vmem:[%s72] sm:$0x1] %vm73, %v71
      %s75 = sld [smem:[#allocation7 + %s68]]
      %s76 = scalar_lea.vmem [#allocation10], %s75
      %v77 = vld [vmem:[%s76] sm:$0x1]
      %s78 = scalar_lea.vmem [#allocation3], %s63
      %79 = vst.msk [vmem:[%s78] sm:$0x1] %vm73, %v77
    $region26: #{run.1} parent=1 // loop_footer
      %s67 = sadd.s32 1, %s63
    $region27: #{run.1} parent=1 // loop_footer_branch
      %62 = sbr.rel target = $region23
    $region28: #{run.1} parent=1 // loop_exit
      _
    %s80 = scalar_lea.vmem [#allocation8], %s61
    %v81 = vld [vmem:[%s80] sm:$0xff]
    %s82 = scalar_lea.vmem [#allocation10], %s61
    %v83 = vld [vmem:[%s82] sm:$0xff]
    %v84 = vlaneseq
    %v85 = vshrl.u32 %v84, 7
    %v86 = vstv %s61
    %v87 = vadd.s32 %v86, %v85
    %v88 = vld [vmem:[#allocation4] sm:$0x1]
    %v89 = vld [vmem:[#allocation2] sm:$0xff]
    %v90 = vld [vmem:[#allocation3] sm:$0xff]
    %v91 = vmul.f32 %v81, %v83
    %vm92 = vcmask 261120
    %v93 = vsel %vm92, %v91, 0.0
    %94 = vadd.xlane.f32.xlu0 %v93
    %v95 = vpop.xlane.xlu0 %94
    %v96 = vmul.f32 %v89, %v83
    %v97 = vsel %vm92, %v96, 0.0
    %98 = vadd.xlane.f32.xlu0 %v97
    %v99 = vpop.xlane.xlu0 %98
    %v100 = vmul.f32 %v81, %v90
    %v101 = vsel %vm92, %v100, 0.0
    %102 = vadd.xlane.f32.xlu0 %v101
    %v103 = vpop.xlane.xlu0 %102
    %v104 = vsub.f32 %v99, %v95
    %v105 = vadd.f32 %v104, 1.0
    %v106 = vmax.f32 %v105, 0.0
    %v107 = vsub.f32 %v103, %v95
    %v108 = vadd.f32 %v107, 1.0
    %v109 = vmax.f32 %v108, 0.0
    %vm110 = vcmp.lt.s32.totalorder %v87, 8
    %v111 = vadd.f32 %v106, %v109
    %v112 = vsel %vm110, %v111, 0.0
    %vm113 = vcmask 7168
    %v114 = vsel %vm113, %v112, 0.0
    %115 = vadd.xlane.f32.xlu0 %v114
    %v116 = vpop.xlane.xlu0 %115
    %v117 = vrot.slane %v116, 4
    %v118 = vadd.f32 %v116, %v117
    %v119 = vrot.slane %v118, 2
    %v120 = vadd.f32 %v118, %v119
    %v121 = vrot.slane %v120, 1
    %v122 = vadd.f32 %v120, %v121
    %s123 = vtos %v122
    %v124 = vstv %s123
    %v125 = vadd.f32 %v88, %v124
    %vm126 = vcmask 0
    %127 = vst.msk [vmem:[#allocation4] sm:$0x1] %vm126, %v125
    // Predicated region
    $region29: #{run.1} parent=1 // pred_check
      %p128 = pneg %p54
    $region30: #{run.1} parent=1 // pred_check_branch
      %130 = sbr.rel (%p128) target = $region32
    $region31: #{run.1} parent=1 // pred_region
      %v131 = vld [vmem:[#allocation4] sm:$0x1]
      %v132 = vadd.f32 %v131, 0.0
      %s133 = vtos %v132
      %v134 = vrcp.pop 8.0
      %v135 = vmul.f32 8.0, %v134
      %v136 = vsub.f32 1.0, %v135
      %v137 = vmul.f32 %v134, %v136
      %v138 = vadd.f32 %v134, %v137
      %vm139 = vweird.f32 %v134
      %v140 = vsel %vm139, %v134, %v138
      %s141 = vtos %v140
      %s142 = smul.f32 %s133, %s141
      %v143 = vstv %s142
      %144 = vst [vmem:[%s4] sm:$0xff] %v143
    $region32: #{run.1} parent=1 // pred_fallthru
      _
    // Predicated region
    $region33: #{run.1} parent=1 // pred_check
      _
    $region34: #{run.1} parent=1 // pred_check_branch
      %146 = sbr.rel (0) target = $region36
    $region35: #{run.1} parent=1 // pred_region
      _
    $region36: #{run.1} parent=1 // pred_fallthru
      _
    // Predicated region
    $region37: #{run.1} parent=1 // pred_check
      _
    $region38: #{run.1} parent=1 // pred_check_branch
      %148 = sbr.rel (0) target = $region40
    $region39: #{run.1} parent=1 // pred_region
      _
    $region40: #{run.1} parent=1 // pred_fallthru
      _
    %149 = vsyncpa [#allocation9], 1
    %150 = vsyncpa [#allocation11], 1

</llo_original>
